<compile_context>
chip_gen: v7x
topology: tpu7x:2x2x1
jax: 0.10.0
libtpu: 0.0.40
codegen_flags: <defaults>
</compile_context>

<pallas_src>
import jax
import jax.numpy as jnp
from jax.experimental import pallas as pl
from jax.experimental.pallas import tpu as pltpu

_POOL_WIN = 49  # 7x7 window == global spatial mean for standard DenseNet121 maps


def _round_up(x, m):
    return ((x + m - 1) // m) * m


def _pick_tile(dim, preferred):
    """Largest preferred tile that divides `dim`; falls back to the full dim."""
    for t in preferred:
        if t <= dim and dim % t == 0:
            return t
    return dim


def _tail_vmem_limit():
    """Generation-aware scoped-VMEM budget for the feature-tail kernels."""
    try:
        cap = pltpu.get_tpu_info().vmem_capacity_bytes
    except Exception:
        cap = 64 * 1024 * 1024
    # ~3/4 of physical: 48 MiB on v7x (64 MiB/TC), 96 MiB on v5e/v6e (128 MiB).
    return max(48 * 1024 * 1024, min(96 * 1024 * 1024, (cap * 3) // 4))


# ---------------------------------------------------------------------------
# Parameter packing (done ONCE at model init — hoisted out of the forward path)
# ---------------------------------------------------------------------------
def init_medterm_classifier_params(w, b, *, use_bf16=True):
    """w: (num_ftrs, num_medterm) [= transpose of PyTorch's (M, F)], b: (M,).

    Pads the output dim to a lane-dense multiple of 128 and casts the weight to
    the MXU compute dtype once, so the per-call wrapper does no parameter work.
    """
    F, M = w.shape
    Mp = _round_up(M, 128)
    cdt = jnp.bfloat16 if use_bf16 else jnp.float32
    wp = jnp.zeros((F, Mp), cdt).at[:, :M].set(w.astype(cdt))
    bp = jnp.zeros((1, Mp), jnp.float32).at[0, :M].set(b.astype(jnp.float32))
    return {"wp": wp, "bp": bp, "F": F, "M": M, "Mp": Mp}


# ---------------------------------------------------------------------------
# Kernel 1: fused Linear + bias + Sigmoid  (classifier mode, full-K block)
# ---------------------------------------------------------------------------
def _linear_sigmoid_kernel(x_ref, w_ref, b_ref, o_ref):
    x = x_ref[...].astype(w_ref.dtype)                 # cast to MXU dtype on-chip
    y = jnp.dot(x, w_ref[...], preferred_element_type=jnp.float32)
    y = y + b_ref[...]                                  # bias + sigmoid in f32
    o_ref[...] = jax.nn.sigmoid(y).astype(o_ref.dtype)


def medterm_classifier(x, packed):
    """x: (B, num_ftrs). packed: output of init_medterm_classifier_params."""
    B, F = x.shape
    assert F == packed["F"], "classifier num_ftrs mismatch"
    wp, bp = packed["wp"], packed["bp"]
    M, Mp = packed["M"], packed["Mp"]
    out_dtype = x.dtype

    # Full K in one block (F = 1024 for DenseNet121 is tiny in VMEM at bf16).
    if B <= 256:
        tm, Bp, xp = B, B, x                # tm == full batch dim: no padding
    else:
        tm = 256
        Bp = _round_up(B, tm)
        xp = jnp.zeros((Bp, F), x.dtype).at[:B].set(x)
    tn = _pick_tile(Mp, (512, 256, 128))

    grid = (Bp // tm, Mp // tn)
    witm = jnp.dtype(wp.dtype).itemsize
    cost = pl.CostEstimate(
        flops=2 * B * F * M,
        transcendentals=B * M,
        bytes_accessed=(Bp * F * jnp.dtype(x.dtype).itemsize + F * Mp * witm
                        + Mp * 4 + Bp * Mp * jnp.dtype(out_dtype).itemsize),
    )

    out = pl.pallas_call(
        _linear_sigmoid_kernel,
        out_shape=jax.ShapeDtypeStruct((Bp, Mp), out_dtype),
        grid_spec=pltpu.PrefetchScalarGridSpec(
            num_scalar_prefetch=0,
            grid=grid,
            in_specs=[
                pl.BlockSpec((tm, F), lambda i, j: (i, 0)),
                pl.BlockSpec((F, tn), lambda i, j: (0, j)),
                pl.BlockSpec((1, tn), lambda i, j: (0, j)),
            ],
            out_specs=pl.BlockSpec((tm, tn), lambda i, j: (i, j)),
        ),
        compiler_params=pltpu.CompilerParams(
            dimension_semantics=("parallel", "parallel"),
            vmem_limit_bytes=32 * 1024 * 1024,
        ),
        cost_estimate=cost,
    )(xp, wp, bp)
    return out[:B, :M]


# ---------------------------------------------------------------------------
# Kernel 2: ReLU + avg_pool2d(7,1) + flatten, NCHW kept (densenet tail)
# ---------------------------------------------------------------------------
def _relu_avgpool_kernel(f_ref, o_ref):
    # f: (tb, Cblk, 49); accumulate in f32 (also handles bf16 inputs on v5e),
    # scale by the exact 1/49 constant.
    f = jnp.maximum(f_ref[...].astype(jnp.float32), 0.0)
    o_ref[...] = (jnp.sum(f, axis=-1) * (1.0 / _POOL_WIN)).astype(o_ref.dtype)


def _batch_tile(B, dtype):
    is_half = jnp.dtype(dtype).itemsize <= 2
    cap = 64 if is_half else 32          # keeps double-buffered blocks <~32 MiB
    if B <= cap:
        return B, B                       # tb == full batch dim, no padding
    tb = cap
    return tb, _round_up(B, tb)


def relu_avgpool_flatten(features):
    """features: (B, C, 7, 7) NCHW (f32 or bf16) -> (B, C), matching
    F.avg_pool2d(F.relu(features), 7, 1).view(B, -1)."""
    B, C, H, W = features.shape
    assert H == 7 and W == 7, "standard DenseNet121 feature-map size"
    out_dtype = features.dtype
    HW = H * W

    f3 = features.reshape(B, C, HW)       # contiguous reshape: free, no transpose
    tb, Bp = _batch_tile(B, features.dtype)
    if Bp != B:
        fp = jnp.zeros((Bp, C, HW), features.dtype).at[:B].set(f3)
    else:
        fp = f3
    cblk = _pick_tile(C, (512, 256, 128)) # 2nd parallel axis: keeps v7x TC#2 busy

    out = pl.pallas_call(
        _relu_avgpool_kernel,
        out_shape=jax.ShapeDtypeStruct((Bp, C), out_dtype),
        grid_spec=pltpu.PrefetchScalarGridSpec(
            num_scalar_prefetch=0,
            grid=(Bp // tb, C // cblk),
            in_specs=[pl.BlockSpec((tb, cblk, HW), lambda i, j: (i, j, 0))],
            out_specs=pl.BlockSpec((tb, cblk), lambda i, j: (i, j)),
        ),
        compiler_params=pltpu.CompilerParams(
            dimension_semantics=("parallel", "parallel"),
            vmem_limit_bytes=_tail_vmem_limit(),
        ),
    )(fp)
    return out[:B]


# ---------------------------------------------------------------------------
# Kernel 3: fused relu + avg-pool + Linear + Sigmoid (tail feeding classifier)
# ---------------------------------------------------------------------------
def _fused_tail_classifier_kernel(f_ref, w_ref, b_ref, o_ref):
    f = jnp.maximum(f_ref[...].astype(jnp.float32), 0.0)    # (tb, C, 49)
    pooled = jnp.sum(f, axis=-1) * (1.0 / _POOL_WIN)          # (tb, C) f32
    y = jnp.dot(pooled.astype(w_ref.dtype), w_ref[...],
                preferred_element_type=jnp.float32)
    y = y + b_ref[...]
    o_ref[...] = jax.nn.sigmoid(y).astype(o_ref.dtype)


def densenet_tail_then_classifier(features, packed):
    """Fused fast path: relu+pool+flatten of (B, C, 7, 7) NCHW then the medterm
    classifier, without writing the pooled (B, C) activations back to HBM."""
    B, C, H, W = features.shape
    assert H == 7 and W == 7
    assert packed["F"] == C, "classifier num_ftrs must equal feature channels"
    wp, bp = packed["wp"], packed["bp"]
    M, Mp = packed["M"], packed["Mp"]
    out_dtype = features.dtype
    HW = H * W

    f3 = features.reshape(B, C, HW)       # free reshape, no transpose
    tb, Bp = _batch_tile(B, features.dtype)
    if Bp != B:
        fp = jnp.zeros((Bp, C, HW), features.dtype).at[:B].set(f3)
    else:
        fp = f3
    tn = _pick_tile(Mp, (512, 256, 128))

    witm = jnp.dtype(wp.dtype).itemsize
    cost = pl.CostEstimate(
        flops=2 * B * C * M + 2 * B * HW * C,
        transcendentals=B * M,
        bytes_accessed=(Bp * C * HW * jnp.dtype(features.dtype).itemsize
                        + C * Mp * witm + Mp * 4
                        + Bp * Mp * jnp.dtype(out_dtype).itemsize),
    )

    out = pl.pallas_call(
        _fused_tail_classifier_kernel,
        out_shape=jax.ShapeDtypeStruct((Bp, Mp), out_dtype),
        grid_spec=pltpu.PrefetchScalarGridSpec(
            num_scalar_prefetch=0,
            grid=(Bp // tb, Mp // tn),
            in_specs=[
                pl.BlockSpec((tb, C, HW), lambda i, j: (i, 0, 0)),
                pl.BlockSpec((C, tn), lambda i, j: (0, j)),
                pl.BlockSpec((1, tn), lambda i, j: (0, j)),
            ],
            out_specs=pl.BlockSpec((tb, tn), lambda i, j: (i, j)),
        ),
        compiler_params=pltpu.CompilerParams(
            dimension_semantics=("parallel", "parallel"),
            vmem_limit_bytes=_tail_vmem_limit(),
        ),
        cost_estimate=cost,
    )(fp, wp, bp)
    return out[:B, :M]


# ---------------------------------------------------------------------------
# Module wrapper mirroring DenseNet121.forward
# ---------------------------------------------------------------------------
def densenet121_forward(input, imgs_features, packed_params, mode="classifier"):
    if mode == "densenet":
        # TODO(synk): densenet121.features backbone (58 convs + batchnorms) not
        # reproduced; imgs_features stands in for its (B, C, 7, 7) NCHW output.
        return relu_avgpool_flatten(imgs_features)
    else:
        return medterm_classifier(input, packed_params)


if __name__ == "__main__":
    key = jax.random.PRNGKey(0)
    k1, k2, k3, k4 = jax.random.split(key, 4)

    num_ftrs, num_medterm, batch = 32, 16, 2

    # Deterministic synthetic parameters (Linear(num_ftrs, num_medterm)),
    # weight stored as (F, M) = transpose of PyTorch's (M, F).
    w = jax.random.normal(k1, (num_ftrs, num_medterm), jnp.float32) * 0.1
    b = jax.random.normal(k2, (num_medterm,), jnp.float32) * 0.1

    # Parameter padding / bf16 cast done once, outside the forward path.
    params_bf16 = init_medterm_classifier_params(w, b, use_bf16=True)
    params_f32 = init_medterm_classifier_params(w, b, use_bf16=False)

    # Classifier-mode input: (B, num_ftrs)
    x = jax.random.normal(k3, (batch, num_ftrs), jnp.float32)
    # Densenet-mode synthetic feature map: (B, C=num_ftrs, 7, 7) NCHW
    feats = jax.random.normal(k4, (batch, num_ftrs, 7, 7), jnp.float32)
    feats_bf16 = feats.astype(jnp.bfloat16)   # as the backbone would emit

    # --- classifier path, f32 operands: exact check ---
    ref_probs = jax.nn.sigmoid(x @ w + b)
    probs_f32 = jax.block_until_ready(
        densenet121_forward(x, feats, params_f32, mode="classifier"))
    assert probs_f32.shape == (batch, num_medterm)
    assert jnp.allclose(probs_f32, ref_probs, atol=1e-5), "classifier f32 mismatch"

    # --- classifier path, bf16 MXU operands (default perf path) ---
    probs_bf16 = jax.block_until_ready(
        densenet121_forward(x, feats, params_bf16, mode="classifier"))
    assert jnp.allclose(probs_bf16, ref_probs, atol=1e-2), "classifier bf16 mismatch"

    # --- densenet-mode tail (f32 features: exact) ---
    ref_pooled = jnp.mean(jnp.maximum(feats, 0.0), axis=(2, 3))
    pooled = jax.block_until_ready(
        densenet121_forward(x, feats, params_f32, mode="densenet"))
    assert pooled.shape == (batch, num_ftrs)
    assert jnp.allclose(pooled, ref_pooled, atol=1e-5), "pool f32 mismatch"

    # --- densenet-mode tail with bf16 features (bandwidth-halving path) ---
    pooled_bf16 = jax.block_until_ready(relu_avgpool_flatten(feats_bf16))
    assert jnp.allclose(pooled_bf16.astype(jnp.float32), ref_pooled,
                        atol=3e-2, rtol=3e-2), "pool bf16 mismatch"

    # --- fused tail + classifier fast path ---
    ref_fused = jax.nn.sigmoid(ref_pooled @ w + b)
    fused = jax.block_until_ready(densenet_tail_then_classifier(feats, params_bf16))
    assert fused.shape == (batch, num_medterm)
    assert jnp.allclose(fused, ref_fused, atol=1e-2), "fused path mismatch"

    fused_bf16 = jax.block_until_ready(
        densenet_tail_then_classifier(feats_bf16, params_bf16))
    assert jnp.allclose(fused_bf16.astype(jnp.float32), ref_fused,
                        atol=3e-2, rtol=3e-2), "fused bf16 path mismatch"

    print("KERNEL_OK")
</pallas_src>

<mosaic_0001>
module attributes {stable_mosaic.version = 11 : i64} {
  func.func @_linear_sigmoid_kernel(%arg0: i32, %arg1: i32, %arg2: memref<2x32xf32, #tpu.memory_space<vmem>>, %arg3: memref<32x128xf32, #tpu.memory_space<vmem>>, %arg4: memref<1x128xf32, #tpu.memory_space<vmem>>, %arg5: memref<2x128xf32, #tpu.memory_space<vmem>>) attributes {dimension_semantics = [#tpu.dimension_semantics<parallel>, #tpu.dimension_semantics<parallel>], iteration_bounds = array<i64: 1, 1>, scalar_prefetch = 0 : i64, scratch_operands = 0 : i64, tpu.core_type = #tpu.core_type<tc>, window_params = [{transform_indices = @transform_0, window_bounds = array<i64: 2, 32>}, {transform_indices = @transform_1, window_bounds = array<i64: 32, 128>}, {transform_indices = @transform_2, window_bounds = array<i64: 1, 128>}, {transform_indices = @transform_3, window_bounds = array<i64: 2, 128>}]} {
    %c0 = arith.constant 0 : index
    %c0_0 = arith.constant 0 : index
    %0 = vector.load %arg2[%c0, %c0_0] : memref<2x32xf32, #tpu.memory_space<vmem>>, vector<2x32xf32>
    %c0_1 = arith.constant 0 : index
    %c0_2 = arith.constant 0 : index
    %1 = vector.load %arg3[%c0_1, %c0_2] : memref<32x128xf32, #tpu.memory_space<vmem>>, vector<32x128xf32>
    %cst = arith.constant dense<0.000000e+00> : vector<2x128xf32>
    %2 = tpu.matmul %0, %1, %cst {dimension_numbers = #tpu.dot_dimension_numbers<[1], [0], [0], [1], [0, 0, 1, 1], [], []>} : vector<2x32xf32>, vector<32x128xf32>, vector<2x128xf32> -> vector<2x128xf32>
    %c0_3 = arith.constant 0 : index
    %c0_4 = arith.constant 0 : index
    %3 = vector.load %arg4[%c0_3, %c0_4] : memref<1x128xf32, #tpu.memory_space<vmem>>, vector<1x128xf32>
    %4 = vector.broadcast %3 : vector<1x128xf32> to vector<2x128xf32>
    %5 = arith.addf %2, %4 : vector<2x128xf32>
    %6 = arith.negf %5 : vector<2x128xf32>
    %7 = math.exp %6 : vector<2x128xf32>
    %cst_5 = arith.constant 1.000000e+00 : f32
    %8 = vector.broadcast %cst_5 : f32 to vector<2x128xf32>
    %9 = arith.addf %8, %7 : vector<2x128xf32>
    %10 = arith.divf %8, %9 : vector<2x128xf32>
    %c0_6 = arith.constant 0 : index
    %c0_7 = arith.constant 0 : index
    %11 = vector.load %arg5[%c0_6, %c0_7] : memref<2x128xf32, #tpu.memory_space<vmem>>, vector<2x128xf32>
    tpu.vector_store %arg5[%c0_6, %c0_7], %10 {strides = array<i32>} : memref<2x128xf32, #tpu.memory_space<vmem>>, vector<2x128xf32>,
    return
  }
  func.func @transform_0(%arg0: i32, %arg1: i32) -> (i32, i32) {
    %c0_i32 = arith.constant 0 : i32
    %c0_i32_0 = arith.constant 0 : i32
    return %arg0, %c0_i32 : i32, i32
  }
  func.func @transform_1(%arg0: i32, %arg1: i32) -> (i32, i32) {
    %c0_i32 = arith.constant 0 : i32
    %c0_i32_0 = arith.constant 0 : i32
    return %c0_i32, %arg1 : i32, i32
  }
  func.func @transform_2(%arg0: i32, %arg1: i32) -> (i32, i32) {
    %c0_i32 = arith.constant 0 : i32
    %c0_i32_0 = arith.constant 0 : i32
    return %c0_i32, %arg1 : i32, i32
  }
  func.func @transform_3(%arg0: i32, %arg1: i32) -> (i32, i32) {
    %c0_i32 = arith.constant 0 : i32
    return %arg0, %arg1 : i32, i32
  }
}

</mosaic_0001>

<llo_original>
// kernel: tpu_custom_call.1
$region0: #{tpu_custom_call.1}
  #allocation0 [shape = 'u32[]', space=smem, size = 0x4, offset = 0x4, fixed_abs, tag = 'smem constant byte address 0x4 - core index']
  #allocation1 [shape = 'u32[144,128]{1,0:T(1,128)}', space=vmem, size = 0x12000, scoped, tag = 'internal scratch']
  %s0 = inlined_call_operand.hbm [shape: f32[2,32], index: 0, kind: input, shape index: {}]
  %s1 = inlined_call_operand.hbm [shape: f32[32,128], index: 1, kind: input, shape index: {}]
  %s2 = inlined_call_operand.vmem [shape: f32[1,128], index: 2, kind: input, shape index: {}]
  %s3 = inlined_call_operand.hbm [shape: f32[2,128], index: 3, kind: output, shape index: {}]
  %s4 = sld [smem:[#allocation0]]
  $region30: #{tpu_custom_call.1} parent=0
    _
  %s6 = ssub.s32 1, %s4
  %s7 = scalar_select 0, %s6, %s4
  $region1: #{tpu_custom_call.1} parent=0
    #allocation2 [shape = 'u8[1024]{0}', space=vmem, size = 0x400, scoped, tag = 'input window, operand 0, single buffered']
    #allocation3 [shape = 's32[1]{0}', space=sflag, size = 0x4, scoped, tag = 'scoped memory for tpu_custom_call.1']
    #allocation4 [shape = 's32[1]{0}', space=sflag, size = 0x4, scoped, tag = 'scoped memory for tpu_custom_call.1']
    #allocation5 [shape = 'u8[16384]{0}', space=vmem, size = 0x4000, scoped, tag = 'input window, operand 1, single buffered']
    #allocation6 [shape = 's32[1]{0}', space=sflag, size = 0x4, scoped, tag = 'scoped memory for tpu_custom_call.1']
    #allocation7 [shape = 'u8[1024]{0}', space=vmem, size = 0x400, scoped, tag = 'output window, operand 0, single buffered']
    %8 = vsyncpa [#allocation3], 0
    %9 = vsyncpa [#allocation6], 0
    %10 = vsyncpa [#allocation4], 0
    // Predicated region
    $region2: #{tpu_custom_call.1} parent=1 // pred_check
      _
    $region3: #{tpu_custom_call.1} parent=1 // pred_check_branch
      %12 = sbr.rel (0) target = $region5
    $region4: #{tpu_custom_call.1} parent=1 // pred_region
      %s14 = ssub.s32 32, 32
      %15 = vsyncadd [#allocation3], %s14
      %s17 = sshll.u32 [#allocation2], 4
      %s18 = int_to_ptr.vmem [resolvable:$true] %s17
      %20 = dma.hbm_to_vmem [thread:$0]  %s0, 32, %s18, [#allocation3]
    $region5: #{tpu_custom_call.1} parent=1 // pred_fallthru
      _
    // Predicated region
    $region6: #{tpu_custom_call.1} parent=1 // pred_check
      _
    $region7: #{tpu_custom_call.1} parent=1 // pred_check_branch
      %22 = sbr.rel (0) target = $region9
    $region8: #{tpu_custom_call.1} parent=1 // pred_region
      %s24 = ssub.s32 512, 512
      %25 = vsyncadd [#allocation6], %s24
      %s26 = sshll.u32 [#allocation5], 4
      %s27 = int_to_ptr.vmem [resolvable:$true] %s26
      %32 = dma.hbm_to_vmem [thread:$0]  %s1, 512, %s27, [#allocation6], 128, 128, 8
    $region9: #{tpu_custom_call.1} parent=1 // pred_fallthru
      _
    // Predicated region
    $region10: #{tpu_custom_call.1} parent=1 // pred_check
      _
    $region11: #{tpu_custom_call.1} parent=1 // pred_check_branch
      %34 = sbr.rel (0) target = $region13
    $region12: #{tpu_custom_call.1} parent=1 // pred_region
      _
    $region13: #{tpu_custom_call.1} parent=1 // pred_fallthru
      _
    // Predicated region
    $region14: #{tpu_custom_call.1} parent=1 // pred_check
      _
    $region15: #{tpu_custom_call.1} parent=1 // pred_check_branch
      %36 = sbr.rel (0) target = $region17
    $region16: #{tpu_custom_call.1} parent=1 // pred_region
      %37 = dma.done [#allocation3], 32
    $region17: #{tpu_custom_call.1} parent=1 // pred_fallthru
      _
    // Predicated region
    $region18: #{tpu_custom_call.1} parent=1 // pred_check
      _
    $region19: #{tpu_custom_call.1} parent=1 // pred_check_branch
      %39 = sbr.rel (0) target = $region21
    $region20: #{tpu_custom_call.1} parent=1 // pred_region
      %40 = dma.done [#allocation6], 512
    $region21: #{tpu_custom_call.1} parent=1 // pred_fallthru
      _
    %v41 = vld [vmem:[#allocation2] sm:$0x3]
    %v42 = vld [vmem:[#allocation5] sm:$0xff]
    %v43 = vld [vmem:[#allocation5 + $0x8] sm:$0xff]
    %v44 = vld [vmem:[#allocation5 + $0x10] sm:$0xff]
    %v45 = vld [vmem:[#allocation5 + $0x18] sm:$0xff]
    %v46 = vld [vmem:[%s2] sm:$0x1]
    %v48 = vlaneseq
    %v49 = vshrl.u32 %v48, 7
    %v50 = vsub.s32 0, %v49
    %v51 = vrot.slane %v46, %v50
    %vm53 = vcmask 261120
    %v55 = vsel %vm53, %v41, 0
    %57 = vmatprep.subr.mxu0 0.0
    %58 = vmatpush1.msra.mxu0 %v42
    %59 = vmatprep.subr.mxu0 0.0
    %60 = vmatpush1.msra.mxu0 %v43
    %61 = vmatprep.subr.mxu0 0.0
    %62 = vmatpush1.msra.mxu0 %v44
    %63 = vmatprep.subr.mxu0 0.0
    %64 = vmatpush1.msra.mxu0 %v45
    %65 = vmatprep.subr.mxu0 0.0
    %66 = vmatpush1.msra.mxu0 0.0
    %67 = vmatprep.subr.mxu0 0.0
    %68 = vmatpush1.msra.mxu0 0.0
    %69 = vmatprep.subr.mxu0 0.0
    %70 = vmatpush1.msra.mxu0 0.0
    %71 = vmatprep.subr.mxu0 0.0
    %72 = vmatpush1.msra.mxu0 0.0
    %73 = vmatprep.subr.mxu0 0.0
    %74 = vmatpush1.msra.mxu0 0.0
    %75 = vmatprep.subr.mxu0 0.0
    %76 = vmatpush1.msra.mxu0 0.0
    %77 = vmatprep.subr.mxu0 0.0
    %78 = vmatpush1.msra.mxu0 0.0
    %79 = vmatprep.subr.mxu0 0.0
    %80 = vmatpush1.msra.mxu0 0.0
    %81 = vmatprep.subr.mxu0 0.0
    %82 = vmatpush1.msra.mxu0 0.0
    %83 = vmatprep.subr.mxu0 0.0
    %84 = vmatpush1.msra.mxu0 0.0
    %85 = vmatprep.subr.mxu0 0.0
    %86 = vmatpush1.msra.mxu0 0.0
    %87 = vmatprep.subr.mxu0 0.0
    %88 = vmatpush1.msra.mxu0 0.0
    %89 = vmatprep.subr.mxu0 0.0
    %90 = vmatpush1.msra.mxu0 0.0
    %91 = vmatprep.subr.mxu0 0.0
    %92 = vmatpush1.msra.mxu0 0.0
    %93 = vmatprep.subr.mxu0 0.0
    %94 = vmatpush1.msra.mxu0 0.0
    %95 = vmatprep.subr.mxu0 0.0
    %96 = vmatpush1.msra.mxu0 0.0
    %97 = vmatprep.subr.mxu0 0.0
    %98 = vmatpush1.msra.mxu0 0.0
    %99 = vmatprep.subr.mxu0 0.0
    %100 = vmatpush1.msra.mxu0 0.0
    %101 = vmatprep.subr.mxu0 0.0
    %102 = vmatpush1.msra.mxu0 0.0
    %103 = vmatprep.subr.mxu0 0.0
    %104 = vmatpush1.msra.mxu0 0.0
    %105 = vmatprep.subr.mxu0 0.0
    %106 = vmatpush1.msra.mxu0 0.0
    %107 = vmatprep.subr.mxu0 0.0
    %108 = vmatpush1.msra.mxu0 0.0
    %109 = vmatprep.subr.mxu0 0.0
    %110 = vmatpush1.msra.mxu0 0.0
    %111 = vmatprep.subr.mxu0 0.0
    %112 = vmatpush1.msra.mxu0 0.0
    %113 = vmatprep.subr.mxu0 0.0
    %114 = vmatpush1.msra.mxu0 0.0
    %115 = vmatprep.subr.mxu0 0.0
    %116 = vmatpush1.msra.mxu0 0.0
    %117 = vmatprep.subr.mxu0 0.0
    %118 = vmatpush1.msra.mxu0 0.0
    %119 = vmatprep.subr.mxu0 0.0
    %120 = vmatpush1.msra.mxu0 0.0
    %121 = vmatprep.mubr.f32.mxu0 0.0
    %122 = vmatmul.mubr.f32.gmra.mrb[0].mxu0 %v55
    %v123 = vpop.f32.mrb[0].mxu0
    %v124 = vadd.f32 %v51, %v123
    %v125 = vpop.f32.mrb[0].mxu0
    %126 = vdwg.mxu0
    %v127 = vxor.u32 %v124, 2147483648
    %v128 = vmul.f32 %v127, 1.442695
    %v129 = vpow.pop %v128
    %v130 = vadd.f32 %v129, 1.0
    %v131 = vrcp.pop %v130
    %v132 = vmul.f32 1.0, %v131
    %133 = vst [vmem:[#allocation7] sm:$0x3] %v132
    // Predicated region
    $region22: #{tpu_custom_call.1} parent=1 // pred_check
      _
    $region23: #{tpu_custom_call.1} parent=1 // pred_check_branch
      %135 = sbr.rel (0) target = $region25
    $region24: #{tpu_custom_call.1} parent=1 // pred_region
      %s137 = ssub.s32 32, 32
      %138 = vsyncadd [#allocation4], %s137
      %s140 = sshll.u32 [#allocation7], 4
      %s141 = int_to_ptr.vmem [resolvable:$true] %s140
      %143 = dma.vmem_to_hbm [thread:$0]  %s141, 32, %s3, [#allocation4]
    $region25: #{tpu_custom_call.1} parent=1 // pred_fallthru
      _
    // Predicated region
    $region26: #{tpu_custom_call.1} parent=1 // pred_check
      _
    $region27: #{tpu_custom_call.1} parent=1 // pred_check_branch
      %145 = sbr.rel (0) target = $region29
    $region28: #{tpu_custom_call.1} parent=1 // pred_region
      %146 = dma.done [#allocation4], 32
    $region29: #{tpu_custom_call.1} parent=1 // pred_fallthru
      _
    %147 = vsyncpa [#allocation3], 1
    %148 = vsyncpa [#allocation6], 1
    %149 = vsyncpa [#allocation4], 1

</llo_original>
